<compile_context>
chip_gen: v5e
topology: v5e:2x2
jax: 0.10.0
libtpu: 0.0.40
codegen_flags: <defaults>
</compile_context>

<pallas_src>
import math

import jax
import jax.numpy as jnp
from jax import lax
from jax.experimental import pallas as pl
from jax.experimental.pallas import tpu as pltpu


def _make_downsample_kernel(H, W, Cin, Cout, K):
    pad = K // 2                          # reflection pad = 1 for K = 3
    Hp, Wp = H + 2 * pad, W + 2 * pad
    Wc = Wp - K + 1                       # stride-1 column positions (== W)
    Ho = (Hp - K) // 2 + 1
    Wo = (Wp - K) // 2 + 1
    KKC = K * K * Cin

    def kernel(x_ref, w_ref, b_ref, o_ref):
        x = x_ref[0]                                          # (H, W, Cin), native dtype

        # ---- in-kernel reflection pad (pad=1): rows then columns ------------
        xp = jnp.concatenate([x[1:2], x, x[H - 2:H - 1]], axis=0)           # (Hp, W, C)
        xp = jnp.concatenate([xp[:, 1:2], xp, xp[:, W - 2:W - 1]], axis=1)  # (Hp, Wp, C)

        # ---- im2col: build one (Ho*Wc, K*K*Cin) patch matrix ----------------
        cols = []
        for kh in range(K):
            # rows kh, kh+2, ..., kh+2*(Ho-1): slice 2*Ho rows, split the major
            # dim into (Ho, 2), keep parity 0.  Lane/sublane dims untouched.
            rows = xp[kh:kh + 2 * Ho]                         # (2*Ho, Wp, C)
            rows = rows.reshape(Ho, 2, Wp, Cin)[:, 0:1].reshape(Ho, Wp, Cin)
            for kw in range(K):
                tap = rows[:, kw:kw + Wc, :]                  # (Ho, Wc, C)
                cols.append(tap.reshape(Ho * Wc, Cin))
        patches = jnp.concatenate(cols, axis=1)               # (Ho*Wc, KKC)

        # stride-2 column subsample: im2col row index = oh*Wc + w, keep even w.
        patches = patches.reshape(Ho * Wo, 2, KKC)[:, 0:1]
        patches = patches.reshape(Ho * Wo, KKC)               # (Ho*Wo, KKC)

        # ---- single fused matmul on the MXU ---------------------------------
        # out_t[o, r] = sum_k w[o, k] * patches[r, k]
        out_t = lax.dot_general(
            w_ref[...], patches,
            dimension_numbers=(((1,), (1,)), ((), ())),
            preferred_element_type=jnp.float32)               # (Cout, Ho*Wo)
        out_t = out_t + b_ref[...].astype(jnp.float32)        # bias (Cout,1) bcast

        o_ref[0] = out_t.astype(o_ref.dtype)

    return kernel


def downsample_forward(x_nchw, weight, bias):
    """Forward pass of Downsample: reflection-pad(1) + 3x3 stride-2 conv + bias."""
    N, Cin, H, W = x_nchw.shape
    Cout, Cin_w, K, K2 = weight.shape
    assert Cin == Cin_w and K == K2 == 3
    assert bias.shape == (Cout,)
    assert H % 2 == 0 and W % 2 == 0, "stride-2 kernel assumes even spatial dims"
    pad = K // 2
    Ho = (H + 2 * pad - K) // 2 + 1
    Wo = (W + 2 * pad - K) // 2 + 1

    # Layout glue only: NCHW -> NHWC input; weight -> (Cout, K*K*Cin) with
    # (kh, kw, cin) column order; bias -> (Cout, 1) column.
    x_nhwc = jnp.transpose(x_nchw, (0, 2, 3, 1))
    w_flat = jnp.transpose(weight, (0, 2, 3, 1)).reshape(Cout, K * K * Cin)
    b_col = bias.reshape(Cout, 1)

    kernel = _make_downsample_kernel(H, W, Cin, Cout, K)

    out_t = pl.pallas_call(
        kernel,
        out_shape=jax.ShapeDtypeStruct((N, Cout, Ho * Wo), x_nchw.dtype),
        grid_spec=pltpu.PrefetchScalarGridSpec(
            num_scalar_prefetch=0,
            grid=(N,),
            in_specs=[
                pl.BlockSpec((1, H, W, Cin), lambda n: (n, 0, 0, 0)),
                pl.BlockSpec((Cout, K * K * Cin), lambda n: (0, 0)),
                pl.BlockSpec((Cout, 1), lambda n: (0, 0)),
            ],
            out_specs=pl.BlockSpec((1, Cout, Ho * Wo), lambda n: (n, 0, 0)),
        ),
        compiler_params=pltpu.CompilerParams(
            dimension_semantics=("parallel",)),
    )(x_nhwc, w_flat, b_col)

    # (N, Cout, Ho*Wo) is already channel-major: reshape straight into NCHW.
    return out_t.reshape(N, Cout, Ho, Wo)


if __name__ == "__main__":
    key = jax.random.PRNGKey(0)
    kx, kwt, kb = jax.random.split(key, 3)

    N, Cin, H, W = 2, 4, 16, 16
    K = 3
    Cout = 2 * Cin                      # Downsample doubles the channel count

    x = jax.random.normal(kx, (N, Cin, H, W), dtype=jnp.float32)
    # deterministic stand-in for nn.Conv2d's default (kaiming-uniform) init
    bound = 1.0 / math.sqrt(Cin * K * K)
    weight = jax.random.uniform(kwt, (Cout, Cin, K, K),
                                minval=-bound, maxval=bound, dtype=jnp.float32)
    bias = jax.random.uniform(kb, (Cout,),
                              minval=-bound, maxval=bound, dtype=jnp.float32)

    out = downsample_forward(x, weight, bias)
    out = jax.block_until_ready(out)

    # reference: reflection pad + stride-2 VALID conv + bias (pure XLA)
    x_pad = jnp.pad(x, ((0, 0), (0, 0), (1, 1), (1, 1)), mode="reflect")
    ref = lax.conv_general_dilated(
        x_pad, weight, window_strides=(2, 2), padding="VALID",
        dimension_numbers=("NCHW", "OIHW", "NCHW"))
    ref = ref + bias.reshape(1, Cout, 1, 1)

    assert out.shape == (N, Cout, H // 2, W // 2)
    assert jnp.max(jnp.abs(out - ref)) < 1e-4
    print("KERNEL_OK")
</pallas_src>

<mosaic_0001>
module attributes {stable_mosaic.version = 11 : i64} {
  func.func @kernel(%arg0: i32, %arg1: memref<1x16x16x4xf32, #tpu.memory_space<vmem>>, %arg2: memref<8x36xf32, #tpu.memory_space<vmem>>, %arg3: memref<8x1xf32, #tpu.memory_space<vmem>>, %arg4: memref<1x8x64xf32, #tpu.memory_space<vmem>>) attributes {dimension_semantics = [#tpu.dimension_semantics<parallel>], iteration_bounds = array<i64: 2>, scalar_prefetch = 0 : i64, scratch_operands = 0 : i64, tpu.core_type = #tpu.core_type<tc>, window_params = [{transform_indices = @transform_0, window_bounds = array<i64: 1, 16, 16, 4>}, {pipeline_mode = #tpu.pipeline_mode<synchronous>, transform_indices = @transform_1, window_bounds = array<i64: 8, 36>}, {pipeline_mode = #tpu.pipeline_mode<synchronous>, transform_indices = @transform_2, window_bounds = array<i64: 8, 1>}, {transform_indices = @transform_3, window_bounds = array<i64: 1, 8, 64>}]} {
    %c0 = arith.constant 0 : index
    %c0_0 = arith.constant 0 : index
    %c0_1 = arith.constant 0 : index
    %c0_2 = arith.constant 0 : index
    %0 = vector.load %arg1[%c0, %c0_0, %c0_1, %c0_2] : memref<1x16x16x4xf32, #tpu.memory_space<vmem>>, vector<1x16x16x4xf32>
    %1 = vector.shape_cast %0 : vector<1x16x16x4xf32> to vector<16x16x4xf32>
    %2 = vector.extract_strided_slice %1 {offsets = [1, 0, 0], sizes = [1, 16, 4], strides = [1, 1, 1]} : vector<16x16x4xf32> to vector<1x16x4xf32>
    %3 = vector.extract_strided_slice %1 {offsets = [14, 0, 0], sizes = [1, 16, 4], strides = [1, 1, 1]} : vector<16x16x4xf32> to vector<1x16x4xf32>
    %4 = tpu.concatenate %2, %1, %3 in 0 : vector<1x16x4xf32>, vector<16x16x4xf32>, vector<1x16x4xf32> -> vector<18x16x4xf32>
    %5 = vector.extract_strided_slice %4 {offsets = [0, 1, 0], sizes = [18, 1, 4], strides = [1, 1, 1]} : vector<18x16x4xf32> to vector<18x1x4xf32>
    %6 = vector.extract_strided_slice %4 {offsets = [0, 14, 0], sizes = [18, 1, 4], strides = [1, 1, 1]} : vector<18x16x4xf32> to vector<18x1x4xf32>
    %7 = tpu.concatenate %5, %4, %6 in 1 : vector<18x1x4xf32>, vector<18x16x4xf32>, vector<18x1x4xf32> -> vector<18x18x4xf32>
    %8 = vector.extract_strided_slice %7 {offsets = [0, 0, 0], sizes = [16, 18, 4], strides = [1, 1, 1]} : vector<18x18x4xf32> to vector<16x18x4xf32>
    %9 = vector.shape_cast %8 : vector<16x18x4xf32> to vector<8x2x18x4xf32>
    %10 = vector.extract_strided_slice %9 {offsets = [0, 0, 0, 0], sizes = [8, 1, 18, 4], strides = [1, 1, 1, 1]} : vector<8x2x18x4xf32> to vector<8x1x18x4xf32>
    %11 = vector.shape_cast %10 : vector<8x1x18x4xf32> to vector<8x18x4xf32>
    %12 = vector.extract_strided_slice %11 {offsets = [0, 0, 0], sizes = [8, 16, 4], strides = [1, 1, 1]} : vector<8x18x4xf32> to vector<8x16x4xf32>
    %13 = vector.shape_cast %12 : vector<8x16x4xf32> to vector<128x4xf32>
    %14 = vector.extract_strided_slice %11 {offsets = [0, 1, 0], sizes = [8, 16, 4], strides = [1, 1, 1]} : vector<8x18x4xf32> to vector<8x16x4xf32>
    %15 = vector.shape_cast %14 : vector<8x16x4xf32> to vector<128x4xf32>
    %16 = vector.extract_strided_slice %11 {offsets = [0, 2, 0], sizes = [8, 16, 4], strides = [1, 1, 1]} : vector<8x18x4xf32> to vector<8x16x4xf32>
    %17 = vector.shape_cast %16 : vector<8x16x4xf32> to vector<128x4xf32>
    %18 = vector.extract_strided_slice %7 {offsets = [1, 0, 0], sizes = [16, 18, 4], strides = [1, 1, 1]} : vector<18x18x4xf32> to vector<16x18x4xf32>
    %19 = vector.shape_cast %18 : vector<16x18x4xf32> to vector<8x2x18x4xf32>
    %20 = vector.extract_strided_slice %19 {offsets = [0, 0, 0, 0], sizes = [8, 1, 18, 4], strides = [1, 1, 1, 1]} : vector<8x2x18x4xf32> to vector<8x1x18x4xf32>
    %21 = vector.shape_cast %20 : vector<8x1x18x4xf32> to vector<8x18x4xf32>
    %22 = vector.extract_strided_slice %21 {offsets = [0, 0, 0], sizes = [8, 16, 4], strides = [1, 1, 1]} : vector<8x18x4xf32> to vector<8x16x4xf32>
    %23 = vector.shape_cast %22 : vector<8x16x4xf32> to vector<128x4xf32>
    %24 = vector.extract_strided_slice %21 {offsets = [0, 1, 0], sizes = [8, 16, 4], strides = [1, 1, 1]} : vector<8x18x4xf32> to vector<8x16x4xf32>
    %25 = vector.shape_cast %24 : vector<8x16x4xf32> to vector<128x4xf32>
    %26 = vector.extract_strided_slice %21 {offsets = [0, 2, 0], sizes = [8, 16, 4], strides = [1, 1, 1]} : vector<8x18x4xf32> to vector<8x16x4xf32>
    %27 = vector.shape_cast %26 : vector<8x16x4xf32> to vector<128x4xf32>
    %28 = vector.extract_strided_slice %7 {offsets = [2, 0, 0], sizes = [16, 18, 4], strides = [1, 1, 1]} : vector<18x18x4xf32> to vector<16x18x4xf32>
    %29 = vector.shape_cast %28 : vector<16x18x4xf32> to vector<8x2x18x4xf32>
    %30 = vector.extract_strided_slice %29 {offsets = [0, 0, 0, 0], sizes = [8, 1, 18, 4], strides = [1, 1, 1, 1]} : vector<8x2x18x4xf32> to vector<8x1x18x4xf32>
    %31 = vector.shape_cast %30 : vector<8x1x18x4xf32> to vector<8x18x4xf32>
    %32 = vector.extract_strided_slice %31 {offsets = [0, 0, 0], sizes = [8, 16, 4], strides = [1, 1, 1]} : vector<8x18x4xf32> to vector<8x16x4xf32>
    %33 = vector.shape_cast %32 : vector<8x16x4xf32> to vector<128x4xf32>
    %34 = vector.extract_strided_slice %31 {offsets = [0, 1, 0], sizes = [8, 16, 4], strides = [1, 1, 1]} : vector<8x18x4xf32> to vector<8x16x4xf32>
    %35 = vector.shape_cast %34 : vector<8x16x4xf32> to vector<128x4xf32>
    %36 = vector.extract_strided_slice %31 {offsets = [0, 2, 0], sizes = [8, 16, 4], strides = [1, 1, 1]} : vector<8x18x4xf32> to vector<8x16x4xf32>
    %37 = vector.shape_cast %36 : vector<8x16x4xf32> to vector<128x4xf32>
    %38 = tpu.concatenate %13, %15, %17, %23, %25, %27, %33, %35, %37 in 1 : vector<128x4xf32>, vector<128x4xf32>, vector<128x4xf32>, vector<128x4xf32>, vector<128x4xf32>, vector<128x4xf32>, vector<128x4xf32>, vector<128x4xf32>, vector<128x4xf32> -> vector<128x36xf32>
    %39 = vector.shape_cast %38 : vector<128x36xf32> to vector<64x2x36xf32>
    %40 = vector.extract_strided_slice %39 {offsets = [0, 0, 0], sizes = [64, 1, 36], strides = [1, 1, 1]} : vector<64x2x36xf32> to vector<64x1x36xf32>
    %41 = vector.shape_cast %40 : vector<64x1x36xf32> to vector<64x36xf32>
    %c0_3 = arith.constant 0 : index
    %c0_4 = arith.constant 0 : index
    %42 = vector.load %arg2[%c0_3, %c0_4] : memref<8x36xf32, #tpu.memory_space<vmem>>, vector<8x36xf32>
    %cst = arith.constant dense<0.000000e+00> : vector<8x64xf32>
    %43 = tpu.matmul %42, %41, %cst {dimension_numbers = #tpu.dot_dimension_numbers<[1], [1], [0], [0], [0, 0, 1, 0], [], []>} : vector<8x36xf32>, vector<64x36xf32>, vector<8x64xf32> -> vector<8x64xf32>
    %c0_5 = arith.constant 0 : index
    %c0_6 = arith.constant 0 : index
    %44 = vector.load %arg3[%c0_5, %c0_6] : memref<8x1xf32, #tpu.memory_space<vmem>>, vector<8x1xf32>
    %45 = vector.broadcast %44 : vector<8x1xf32> to vector<8x64xf32>
    %46 = arith.addf %43, %45 : vector<8x64xf32>
    %c0_7 = arith.constant 0 : index
    %c0_8 = arith.constant 0 : index
    %c0_9 = arith.constant 0 : index
    %47 = vector.load %arg4[%c0_7, %c0_8, %c0_9] : memref<1x8x64xf32, #tpu.memory_space<vmem>>, vector<1x8x64xf32>
    %48 = vector.shape_cast %47 : vector<1x8x64xf32> to vector<8x64xf32>
    %49 = vector.shape_cast %46 : vector<8x64xf32> to vector<1x8x64xf32>
    tpu.vector_store %arg4[%c0_7, %c0_8, %c0_9], %49 {strides = array<i32>} : memref<1x8x64xf32, #tpu.memory_space<vmem>>, vector<1x8x64xf32>,
    return
  }
  func.func @transform_0(%arg0: i32) -> (i32, i32, i32, i32) {
    %c0_i32 = arith.constant 0 : i32
    %c0_i32_0 = arith.constant 0 : i32
    %c0_i32_1 = arith.constant 0 : i32
    %c0_i32_2 = arith.constant 0 : i32
    return %arg0, %c0_i32, %c0_i32_0, %c0_i32_1 : i32, i32, i32, i32
  }
  func.func @transform_1(%arg0: i32) -> (i32, i32) {
    %c0_i32 = arith.constant 0 : i32
    %c0_i32_0 = arith.constant 0 : i32
    %c0_i32_1 = arith.constant 0 : i32
    return %c0_i32, %c0_i32_0 : i32, i32
  }
  func.func @transform_2(%arg0: i32) -> (i32, i32) {
    %c0_i32 = arith.constant 0 : i32
    %c0_i32_0 = arith.constant 0 : i32
    %c0_i32_1 = arith.constant 0 : i32
    return %c0_i32, %c0_i32_0 : i32, i32
  }
  func.func @transform_3(%arg0: i32) -> (i32, i32, i32) {
    %c0_i32 = arith.constant 0 : i32
    %c0_i32_0 = arith.constant 0 : i32
    %c0_i32_1 = arith.constant 0 : i32
    return %arg0, %c0_i32, %c0_i32_0 : i32, i32, i32
  }
}

</mosaic_0001>

<llo_original>
// kernel: tpu_custom_call.1
$region0: #{tpu_custom_call.1}
  #allocation0 [shape = 'u32[]', space=smem, size = 0x4, offset = 0x4, fixed_abs, tag = 'smem constant byte address 0x4 - core index']
  #allocation1 [shape = 'u32[72,128]{1,0:T(1,128)}', space=vmem, size = 0x9000, scoped, tag = 'internal scratch']
  %s0 = inlined_call_operand.vmem [shape: f32[2,16,16,4], index: 0, kind: input, shape index: {}]
  %s1 = inlined_call_operand.vmem [shape: f32[8,36], index: 1, kind: input, shape index: {}]
  %s2 = inlined_call_operand.vmem [shape: f32[8,1], index: 2, kind: input, shape index: {}]
  %s3 = inlined_call_operand.hbm [shape: f32[2,8,64], index: 3, kind: output, shape index: {}]
  %s4 = sld [smem:[#allocation0]]
  $region45: #{tpu_custom_call.1} parent=0
    _
  %s6 = ssub.s32 1, %s4
  %s7 = scalar_select 0, %s6, %s4
  $region1: #{tpu_custom_call.1} parent=0
    #allocation2 [shape = 'u8[8192]{0}', space=vmem, size = 0x2000, scoped, tag = 'output window, operand 0']
    #allocation3 [shape = 's32[2]{0}', space=sflag, size = 0x8, scoped, tag = 'scoped memory for tpu_custom_call.1']
    %8 = vsyncpa [#allocation3], 0
    %s9 = scalar_lea.sflag [#allocation3], 1
    %10 = vsyncpa %s9, 0
    loop: start=0, step=1, limit=4
    $region2: #{tpu_custom_call.1} parent=1 // loop_pre_header
      _
    $region3: #{tpu_custom_call.1} parent=1 // loop_header
      %s12 = sphi 0, %s16
      %p13 = scmp.ge.s32.totalorder %s12, 4
      %s22 = sphi 0, %s24
      %s25 = sphi 0, %s22
      %s26 = sphi 0, %s25
      %s42 = sphi 0, %s26
      %s46 = sphi 0, %s46
      %s48 = sphi 0, %s46
      %s49 = sphi 0, %s48
      %s63 = sphi 0, %s49
      %s67 = sphi 0, %s67
      %s69 = sphi 0, %s67
      %s70 = sphi 0, %s69
      %s84 = sphi 0, %s70
      %s90 = sphi 0, %s92
      %s93 = sphi 0, %s90
      %s94 = sphi 0, %s93
      %s110 = sphi 0, %s94
    $region4: #{tpu_custom_call.1} parent=1 // loop_header_branch
      %15 = sbr.rel (%p13) target = $region8
    $region5: #{tpu_custom_call.1} parent=1 // loop_body
      %s17 = ssub.s32 %s12, 1
      %s18 = ssub.s32 %s12, 2
      %s19 = sadd.s32 %s12, 1
      %s20 = ssub.s32 %s12, %s19
      %p21 = scmp.eq.s32.totalorder %s20, 0
      %s23 = sadd.s32 %s22, 1
      %s24 = scalar_select %p21, %s22, %s23
      %p27 = pneg %p21
      %p28 = scmp.eq.s32.totalorder %s12, 1
      %p29 = por %p27, %p28
      %p30 = scmp.ne.s32.totalorder %s22, %s25
      %p31 = scmp.eq.s32.totalorder %s12, 0
      %p32 = por %p30, %p31
      %p33 = scmp.ne.s32.totalorder %s22, %s25
      %p34 = scmp.eq.s32.totalorder %s17, 1
      %p35 = por %p33, %p34
      %p36 = scmp.ne.s32.totalorder %s25, %s26
      %p37 = scmp.eq.s32.totalorder %s17, 0
      %p38 = por %p36, %p37
      %p39 = scmp.ne.s32.totalorder %s25, %s26
      %p40 = scmp.eq.s32.totalorder %s18, 1
      %p41 = por %p39, %p40
      %p43 = scmp.ne.s32.totalorder %s26, %s42
      %p44 = scmp.eq.s32.totalorder %s18, 0
      %p45 = por %p43, %p44
      %s47 = sadd.s32 %s46, 1
      %p50 = scmp.eq.s32.totalorder %s12, 1
      %p51 = scmp.ne.s32.totalorder %s46, %s48
      %p52 = scmp.eq.s32.totalorder %s12, 0
      %p53 = por %p51, %p52
      %p54 = scmp.ne.s32.totalorder %s46, %s48
      %p55 = scmp.eq.s32.totalorder %s17, 1
      %p56 = por %p54, %p55
      %p57 = scmp.ne.s32.totalorder %s48, %s49
      %p58 = scmp.eq.s32.totalorder %s17, 0
      %p59 = por %p57, %p58
      %p60 = scmp.ne.s32.totalorder %s48, %s49
      %p61 = scmp.eq.s32.totalorder %s18, 1
      %p62 = por %p60, %p61
      %p64 = scmp.ne.s32.totalorder %s49, %s63
      %p65 = scmp.eq.s32.totalorder %s18, 0
      %p66 = por %p64, %p65
      %s68 = sadd.s32 %s67, 1
      %p71 = scmp.eq.s32.totalorder %s12, 1
      %p72 = scmp.ne.s32.totalorder %s67, %s69
      %p73 = scmp.eq.s32.totalorder %s12, 0
      %p74 = por %p72, %p73
      %p75 = scmp.ne.s32.totalorder %s67, %s69
      %p76 = scmp.eq.s32.totalorder %s17, 1
      %p77 = por %p75, %p76
      %p78 = scmp.ne.s32.totalorder %s69, %s70
      %p79 = scmp.eq.s32.totalorder %s17, 0
      %p80 = por %p78, %p79
      %p81 = scmp.ne.s32.totalorder %s69, %s70
      %p82 = scmp.eq.s32.totalorder %s18, 1
      %p83 = por %p81, %p82
      %p85 = scmp.ne.s32.totalorder %s70, %s84
      %p86 = scmp.eq.s32.totalorder %s18, 0
      %p87 = por %p85, %p86
      %s88 = ssub.s32 %s12, %s19
      %p89 = scmp.eq.s32.totalorder %s88, 0
      %s91 = sadd.s32 %s90, 1
      %s92 = scalar_select %p89, %s90, %s91
      %p95 = pneg %p89
      %p96 = scmp.eq.s32.totalorder %s12, 1
      %p97 = por %p95, %p96
      %p98 = scmp.ne.s32.totalorder %s90, %s93
      %p99 = scmp.eq.s32.totalorder %s12, 0
      %p100 = por %p98, %p99
      %p101 = scmp.ne.s32.totalorder %s90, %s93
      %p102 = scmp.eq.s32.totalorder %s17, 1
      %p103 = por %p101, %p102
      %p104 = scmp.ne.s32.totalorder %s93, %s94
      %p105 = scmp.eq.s32.totalorder %s17, 0
      %p106 = por %p104, %p105
      %p107 = scmp.ne.s32.totalorder %s93, %s94
      %p108 = scmp.eq.s32.totalorder %s18, 1
      %p109 = por %p107, %p108
      %p111 = scmp.ne.s32.totalorder %s94, %s110
      %p112 = scmp.eq.s32.totalorder %s18, 0
      %p113 = por %p111, %p112
      %p114 = scmp.le.s32.totalorder 1, %s12
      %p115 = scmp.lt.s32.totalorder %s12, 3
      %p116 = pnand %p114, %p115
      %p117 = pneg %p116
      // Predicated region
      $region9: #{tpu_custom_call.1} parent=5 // pred_check
        _
      $region10: #{tpu_custom_call.1} parent=5 // pred_check_branch
        %119 = sbr.rel (%p116) target = $region12
      $region11: #{tpu_custom_call.1} parent=5 // pred_region
        %s120 = ssub.s32 %s12, 1
        // Predicated region
        $region13: #{tpu_custom_call.1} parent=11 // pred_check
          %p121 = pneg %p59
        $region14: #{tpu_custom_call.1} parent=11 // pred_check_branch
          %123 = sbr.rel (%p121) target = $region16
        $region15: #{tpu_custom_call.1} parent=11 // pred_region
          _
        $region16: #{tpu_custom_call.1} parent=11 // pred_fallthru
          _
        // Predicated region
        $region17: #{tpu_custom_call.1} parent=11 // pred_check
          %p124 = pneg %p80
        $region18: #{tpu_custom_call.1} parent=11 // pred_check_branch
          %126 = sbr.rel (%p124) target = $region20
        $region19: #{tpu_custom_call.1} parent=11 // pred_region
          _
        $region20: #{tpu_custom_call.1} parent=11 // pred_fallthru
          _
      $region12: #{tpu_custom_call.1} parent=5 // pred_fallthru
        _
      %p127 = scmp.lt.s32.totalorder %s12, 2
      // Predicated region
      $region21: #{tpu_custom_call.1} parent=5 // pred_check
        %p128 = pneg %p127
      $region22: #{tpu_custom_call.1} parent=5 // pred_check_branch
        %130 = sbr.rel (%p128) target = $region24
      $region23: #{tpu_custom_call.1} parent=5 // pred_region
        // Predicated region
        $region25: #{tpu_custom_call.1} parent=23 // pred_check
          %p131 = pneg %p32
        $region26: #{tpu_custom_call.1} parent=23 // pred_check_branch
          %133 = sbr.rel (%p131) target = $region28
        $region27: #{tpu_custom_call.1} parent=23 // pred_region
          %p134 = scmp.lt.s32.totalorder %s12, 1
          %s135 = scalar_select %p134, %s12, 1
          %s136 = smul.addr %s135, 32
          %s137 = smul.addr %s136, 8
          %s138 = scalar_lea.vmem %s0, %s137
        $region28: #{tpu_custom_call.1} parent=23 // pred_fallthru
          _
      $region24: #{tpu_custom_call.1} parent=5 // pred_fallthru
        _
      %p139 = scmp.le.s32.totalorder 1, %s12
      %p140 = scmp.lt.s32.totalorder %s12, 3
      %p141 = pnand %p139, %p140
      %p142 = pneg %p141
      // Predicated region
      $region29: #{tpu_custom_call.1} parent=5 // pred_check
        _
      $region30: #{tpu_custom_call.1} parent=5 // pred_check_branch
        %144 = sbr.rel (%p141) target = $region32
      $region31: #{tpu_custom_call.1} parent=5 // pred_region
        %s145 = ssub.s32 %s12, 1
        %p146 = scmp.lt.s32.totalorder %s17, 1
        %s147 = scalar_select %p146, %s17, 1
        %s148 = smul.addr %s147, 32
        %s149 = smul.addr %s148, 8
        %s150 = scalar_lea.vmem %s0, %s149
        %p151 = pneg %p38
        %p152 = pneg %p35
        %p153 = pneg %p59
        %p154 = pneg %p56
        %p155 = pneg %p80
        %p156 = pneg %p77
        %p157 = pneg %p106
        %p158 = pneg %p103
        %s159 = sand.u32 %s93, 1
        %s160 = scalar_lea.sflag [#allocation3], %s159
        %s161 = sand.u32 %s93, 1
        %s162 = smul.addr %s161, 8
        %s163 = scalar_lea.vmem [#allocation2], %s162
        %p164 = scmp.lt.s32.totalorder %s17, 1
        %s165 = scalar_select %p164, %s17, 1
        %s166 = smul.addr %s165, 32
        %s167 = smul.addr %s166, 8
        %s168 = scalar_lea.vmem %s0, %s167
        %v169 = vld [vmem:[%s168] sm:$0xff]
        %v170 = vld [vmem:[%s168 + $0x8] sm:$0xff]
        %v171 = vld [vmem:[%s168 + $0x10] sm:$0xff]
        %v172 = vld [vmem:[%s168 + $0x18] sm:$0xff]
        %v173 = vld [vmem:[%s168 + $0x20] sm:$0xff]
        %v174 = vld [vmem:[%s168 + $0x28] sm:$0xff]
        %v175 = vld [vmem:[%s168 + $0x30] sm:$0xff]
        %v176 = vld [vmem:[%s168 + $0x38] sm:$0xff]
        %v177 = vld [vmem:[%s168 + $0x40] sm:$0xff]
        %v178 = vld [vmem:[%s168 + $0x48] sm:$0xff]
        %v179 = vld [vmem:[%s168 + $0x50] sm:$0xff]
        %v180 = vld [vmem:[%s168 + $0x58] sm:$0xff]
        %v181 = vld [vmem:[%s168 + $0x60] sm:$0xff]
        %v182 = vld [vmem:[%s168 + $0x68] sm:$0xff]
        %v183 = vld [vmem:[%s168 + $0x70] sm:$0xff]
        %v184 = vld [vmem:[%s168 + $0x78] sm:$0xff]
        %v185 = vld [vmem:[%s168 + $0x80] sm:$0xff]
        %v186 = vld [vmem:[%s168 + $0x88] sm:$0xff]
        %v187 = vld [vmem:[%s168 + $0x90] sm:$0xff]
        %v188 = vld [vmem:[%s168 + $0x98] sm:$0xff]
        %v189 = vld [vmem:[%s168 + $0xa0] sm:$0xff]
        %v190 = vld [vmem:[%s168 + $0xa8] sm:$0xff]
        %v191 = vld [vmem:[%s168 + $0xb0] sm:$0xff]
        %v192 = vld [vmem:[%s168 + $0xb8] sm:$0xff]
        %v193 = vld [vmem:[%s168 + $0xc0] sm:$0xff]
        %v194 = vld [vmem:[%s168 + $0xc8] sm:$0xff]
        %v195 = vld [vmem:[%s168 + $0xd0] sm:$0xff]
        %v196 = vld [vmem:[%s168 + $0xd8] sm:$0xff]
        %v197 = vld [vmem:[%s168 + $0xe0] sm:$0xff]
        %v198 = vld [vmem:[%s168 + $0xe8] sm:$0xff]
        %v199 = vld [vmem:[%s168 + $0xf0] sm:$0xff]
        %v200 = vld [vmem:[%s168 + $0xf8] sm:$0xff]
        %v217 = vrot.slane %v171, 1
        %v218 = vrot.slane %v169, 1
        %v219 = vrot.slane %v173, 1
        %v220 = vrot.slane %v175, 1
        %v221 = vrot.slane %v177, 1
        %v222 = vrot.slane %v179, 1
        %v223 = vrot.slane %v181, 1
        %v224 = vrot.slane %v183, 1
        %v225 = vrot.slane %v185, 1
        %v226 = vrot.slane %v187, 1
        %v227 = vrot.slane %v189, 1
        %v228 = vrot.slane %v191, 1
        %v229 = vrot.slane %v193, 1
        %v230 = vrot.slane %v195, 1
        %v231 = vrot.slane %v197, 1
        %v232 = vrot.slane %v199, 1
        %vm265 = vcmask 1040384
        %v266 = vrot.slane %v171, 7
        %v267 = vrot.slane %v172, 7
        %v268 = vsel %vm265, %v266, %v267
        %v269 = vrot.slane %v169, 7
        %v270 = vrot.slane %v170, 7
        %v271 = vsel %vm265, %v269, %v270
        %v272 = vrot.slane %v173, 7
        %v273 = vrot.slane %v174, 7
        %v274 = vsel %vm265, %v272, %v273
        %v275 = vrot.slane %v175, 7
        %v276 = vrot.slane %v176, 7
        %v277 = vsel %vm265, %v275, %v276
        %v278 = vrot.slane %v177, 7
        %v279 = vrot.slane %v178, 7
        %v280 = vsel %vm265, %v278, %v279
        %v281 = vrot.slane %v179, 7
        %v282 = vrot.slane %v180, 7
        %v283 = vsel %vm265, %v281, %v282
        %v284 = vrot.slane %v181, 7
        %v285 = vrot.slane %v182, 7
        %v286 = vsel %vm265, %v284, %v285
        %v287 = vrot.slane %v183, 7
        %v288 = vrot.slane %v184, 7
        %v289 = vsel %vm265, %v287, %v288
        %v290 = vrot.slane %v185, 7
        %v291 = vrot.slane %v186, 7
        %v292 = vsel %vm265, %v290, %v291
        %v293 = vrot.slane %v187, 7
        %v294 = vrot.slane %v188, 7
        %v295 = vsel %vm265, %v293, %v294
        %v296 = vrot.slane %v189, 7
        %v297 = vrot.slane %v190, 7
        %v298 = vsel %vm265, %v296, %v297
        %v299 = vrot.slane %v191, 7
        %v300 = vrot.slane %v192, 7
        %v301 = vsel %vm265, %v299, %v300
        %v302 = vrot.slane %v193, 7
        %v303 = vrot.slane %v194, 7
        %v304 = vsel %vm265, %v302, %v303
        %v305 = vrot.slane %v195, 7
        %v306 = vrot.slane %v196, 7
        %v307 = vsel %vm265, %v305, %v306
        %v308 = vrot.slane %v197, 7
        %v309 = vrot.slane %v198, 7
        %v310 = vsel %vm265, %v308, %v309
        %v311 = vrot.slane %v199, 7
        %v312 = vrot.slane %v200, 7
        %v313 = vsel %vm265, %v311, %v312
        %v353 = vrot.slane %v172, 5
        %v354 = vrot.slane %v170, 5
        %v355 = vrot.slane %v174, 5
        %v356 = vrot.slane %v176, 5
        %v357 = vrot.slane %v178, 5
        %v358 = vrot.slane %v180, 5
        %v359 = vrot.slane %v182, 5
        %v360 = vrot.slane %v184, 5
        %v361 = vrot.slane %v186, 5
        %v362 = vrot.slane %v188, 5
        %v363 = vrot.slane %v190, 5
        %v364 = vrot.slane %v192, 5
        %v365 = vrot.slane %v194, 5
        %v366 = vrot.slane %v196, 5
        %v367 = vrot.slane %v198, 5
        %v368 = vrot.slane %v200, 5
        %v385 = vsel %vm265, %v217, %v266
        %v386 = vsel %vm265, %v218, %v269
        %v387 = vsel %vm265, %v219, %v272
        %v388 = vsel %vm265, %v220, %v275
        %v389 = vsel %vm265, %v221, %v278
        %v390 = vsel %vm265, %v222, %v281
        %v391 = vsel %vm265, %v223, %v284
        %v392 = vsel %vm265, %v224, %v287
        %v393 = vsel %vm265, %v225, %v290
        %v394 = vsel %vm265, %v226, %v293
        %v395 = vsel %vm265, %v227, %v296
        %v396 = vsel %vm265, %v228, %v299
        %v397 = vsel %vm265, %v229, %v302
        %v398 = vsel %vm265, %v230, %v305
        %v399 = vsel %vm265, %v231, %v308
        %v400 = vsel %vm265, %v232, %v311
        %v401 = vsel %vm265, %v267, %v353
        %v402 = vsel %vm265, %v270, %v354
        %v403 = vsel %vm265, %v273, %v355
        %v404 = vsel %vm265, %v276, %v356
        %v405 = vsel %vm265, %v279, %v357
        %v406 = vsel %vm265, %v282, %v358
        %v407 = vsel %vm265, %v285, %v359
        %v408 = vsel %vm265, %v288, %v360
        %v409 = vsel %vm265, %v291, %v361
        %v410 = vsel %vm265, %v294, %v362
        %v411 = vsel %vm265, %v297, %v363
        %v412 = vsel %vm265, %v300, %v364
        %v413 = vsel %vm265, %v303, %v365
        %v414 = vsel %vm265, %v306, %v366
        %v415 = vsel %vm265, %v309, %v367
        %v416 = vsel %vm265, %v312, %v368
        %vm431 = vcmask 1046528
        %v432 = vrot.slane %v385, 1
        %v433 = vrot.slane %v268, 1
        %v434 = vsel %vm431, %v432, %v433
        %v435 = vrot.slane %v401, 1
        %v436 = vsel %vm431, %v433, %v435
        %v437 = vrot.slane %v388, 1
        %v438 = vrot.slane %v277, 1
        %v439 = vsel %vm431, %v437, %v438
        %v440 = vrot.slane %v404, 1
        %v441 = vsel %vm431, %v438, %v440
        %v442 = vrot.slane %v390, 1
        %v443 = vrot.slane %v283, 1
        %v444 = vsel %vm431, %v442, %v443
        %v445 = vrot.slane %v406, 1
        %v446 = vsel %vm431, %v443, %v445
        %v447 = vrot.slane %v392, 1
        %v448 = vrot.slane %v289, 1
        %v449 = vsel %vm431, %v447, %v448
        %v450 = vrot.slane %v408, 1
        %v451 = vsel %vm431, %v448, %v450
        %v452 = vrot.slane %v394, 1
        %v453 = vrot.slane %v295, 1
        %v454 = vsel %vm431, %v452, %v453
        %v455 = vrot.slane %v410, 1
        %v456 = vsel %vm431, %v453, %v455
        %v457 = vrot.slane %v396, 1
        %v458 = vrot.slane %v301, 1
        %v459 = vsel %vm431, %v457, %v458
        %v460 = vrot.slane %v412, 1
        %v461 = vsel %vm431, %v458, %v460
        %v462 = vrot.slane %v398, 1
        %v463 = vrot.slane %v307, 1
        %v464 = vsel %vm431, %v462, %v463
        %v465 = vrot.slane %v414, 1
        %v466 = vsel %vm431, %v463, %v465
        %vm467 = vcmask 1045504
        %v468 = vrot.slane %v385, 2
        %v469 = vrot.slane %v268, 2
        %v470 = vsel %vm467, %v468, %v469
        %v471 = vrot.slane %v401, 2
        %v472 = vsel %vm467, %v469, %v471
        %v473 = vrot.slane %v388, 2
        %v474 = vrot.slane %v277, 2
        %v475 = vsel %vm467, %v473, %v474
        %v476 = vrot.slane %v404, 2
        %v477 = vsel %vm467, %v474, %v476
        %v478 = vrot.slane %v390, 2
        %v479 = vrot.slane %v283, 2
        %v480 = vsel %vm467, %v478, %v479
        %v481 = vrot.slane %v406, 2
        %v482 = vsel %vm467, %v479, %v481
        %v483 = vrot.slane %v392, 2
        %v484 = vrot.slane %v289, 2
        %v485 = vsel %vm467, %v483, %v484
        %v486 = vrot.slane %v408, 2
        %v487 = vsel %vm467, %v484, %v486
        %v488 = vrot.slane %v394, 2
        %v489 = vrot.slane %v295, 2
        %v490 = vsel %vm467, %v488, %v489
        %v491 = vrot.slane %v410, 2
        %v492 = vsel %vm467, %v489, %v491
        %v493 = vrot.slane %v396, 2
        %v494 = vrot.slane %v301, 2
        %v495 = vsel %vm467, %v493, %v494
        %v496 = vrot.slane %v412, 2
        %v497 = vsel %vm467, %v494, %v496
        %v498 = vrot.slane %v398, 2
        %v499 = vrot.slane %v307, 2
        %v500 = vsel %vm467, %v498, %v499
        %v501 = vrot.slane %v414, 2
        %v502 = vsel %vm467, %v499, %v501
        %v519 = vrot.slane %v386, 1
        %v520 = vrot.slane %v271, 1
        %v521 = vsel %vm431, %v519, %v520
        %v522 = vrot.slane %v402, 1
        %v523 = vsel %vm431, %v520, %v522
        %v524 = vrot.slane %v387, 1
        %v525 = vrot.slane %v274, 1
        %v526 = vsel %vm431, %v524, %v525
        %v527 = vrot.slane %v403, 1
        %v528 = vsel %vm431, %v525, %v527
        %v529 = vrot.slane %v389, 1
        %v530 = vrot.slane %v280, 1
        %v531 = vsel %vm431, %v529, %v530
        %v532 = vrot.slane %v405, 1
        %v533 = vsel %vm431, %v530, %v532
        %v534 = vrot.slane %v391, 1
        %v535 = vrot.slane %v286, 1
        %v536 = vsel %vm431, %v534, %v535
        %v537 = vrot.slane %v407, 1
        %v538 = vsel %vm431, %v535, %v537
        %v539 = vrot.slane %v393, 1
        %v540 = vrot.slane %v292, 1
        %v541 = vsel %vm431, %v539, %v540
        %v542 = vrot.slane %v409, 1
        %v543 = vsel %vm431, %v540, %v542
        %v544 = vrot.slane %v395, 1
        %v545 = vrot.slane %v298, 1
        %v546 = vsel %vm431, %v544, %v545
        %v547 = vrot.slane %v411, 1
        %v548 = vsel %vm431, %v545, %v547
        %v549 = vrot.slane %v397, 1
        %v550 = vrot.slane %v304, 1
        %v551 = vsel %vm431, %v549, %v550
        %v552 = vrot.slane %v413, 1
        %v553 = vsel %vm431, %v550, %v552
        %v554 = vrot.slane %v399, 1
        %v555 = vrot.slane %v310, 1
        %v556 = vsel %vm431, %v554, %v555
        %v557 = vrot.slane %v415, 1
        %v558 = vsel %vm431, %v555, %v557
        %v559 = vrot.slane %v386, 2
        %v560 = vrot.slane %v271, 2
        %v561 = vsel %vm467, %v559, %v560
        %v562 = vrot.slane %v402, 2
        %v563 = vsel %vm467, %v560, %v562
        %v564 = vrot.slane %v387, 2
        %v565 = vrot.slane %v274, 2
        %v566 = vsel %vm467, %v564, %v565
        %v567 = vrot.slane %v403, 2
        %v568 = vsel %vm467, %v565, %v567
        %v569 = vrot.slane %v389, 2
        %v570 = vrot.slane %v280, 2
        %v571 = vsel %vm467, %v569, %v570
        %v572 = vrot.slane %v405, 2
        %v573 = vsel %vm467, %v570, %v572
        %v574 = vrot.slane %v391, 2
        %v575 = vrot.slane %v286, 2
        %v576 = vsel %vm467, %v574, %v575
        %v577 = vrot.slane %v407, 2
        %v578 = vsel %vm467, %v575, %v577
        %v579 = vrot.slane %v393, 2
        %v580 = vrot.slane %v292, 2
        %v581 = vsel %vm467, %v579, %v580
        %v582 = vrot.slane %v409, 2
        %v583 = vsel %vm467, %v580, %v582
        %v584 = vrot.slane %v395, 2
        %v585 = vrot.slane %v298, 2
        %v586 = vsel %vm467, %v584, %v585
        %v587 = vrot.slane %v411, 2
        %v588 = vsel %vm467, %v585, %v587
        %v589 = vrot.slane %v397, 2
        %v590 = vrot.slane %v304, 2
        %v591 = vsel %vm467, %v589, %v590
        %v592 = vrot.slane %v413, 2
        %v593 = vsel %vm467, %v590, %v592
        %v594 = vrot.slane %v399, 2
        %v595 = vrot.slane %v310, 2
        %v596 = vsel %vm467, %v594, %v595
        %v597 = vrot.slane %v415, 2
        %v598 = vsel %vm467, %v595, %v597
        %v601 = vrot.slane %v400, 1
        %v602 = vrot.slane %v313, 1
        %v603 = vsel %vm431, %v601, %v602
        %v604 = vrot.slane %v416, 1
        %v605 = vsel %vm431, %v602, %v604
        %v606 = vrot.slane %v400, 2
        %v607 = vrot.slane %v313, 2
        %v608 = vsel %vm467, %v606, %v607
        %v609 = vrot.slane %v416, 2
        %v610 = vsel %vm467, %v607, %v609
        %611 = vrot.lane.b32.xlu0 %v434, 4
        %v612 = vpop.permute.xlu0 %611
        %613 = vrot.lane.b32.xlu0 %v436, 4
        %v614 = vpop.permute.xlu0 %613
        %615 = vrot.lane.b32.xlu0 %v439, 4
        %v616 = vpop.permute.xlu0 %615
        %617 = vrot.lane.b32.xlu0 %v441, 4
        %v618 = vpop.permute.xlu0 %617
        %619 = vrot.lane.b32.xlu0 %v444, 4
        %v620 = vpop.permute.xlu0 %619
        %621 = vrot.lane.b32.xlu0 %v446, 4
        %v622 = vpop.permute.xlu0 %621
        %623 = vrot.lane.b32.xlu0 %v449, 4
        %v624 = vpop.permute.xlu0 %623
        %625 = vrot.lane.b32.xlu0 %v451, 4
        %v626 = vpop.permute.xlu0 %625
        %627 = vrot.lane.b32.xlu0 %v454, 4
        %v628 = vpop.permute.xlu0 %627
        %629 = vrot.lane.b32.xlu0 %v456, 4
        %v630 = vpop.permute.xlu0 %629
        %631 = vrot.lane.b32.xlu0 %v459, 4
        %v632 = vpop.permute.xlu0 %631
        %633 = vrot.lane.b32.xlu0 %v461, 4
        %v634 = vpop.permute.xlu0 %633
        %635 = vrot.lane.b32.xlu0 %v464, 4
        %v636 = vpop.permute.xlu0 %635
        %637 = vrot.lane.b32.xlu0 %v466, 4
        %v638 = vpop.permute.xlu0 %637
        %653 = vrot.lane.b32.xlu0 %v470, 8
        %v654 = vpop.permute.xlu0 %653
        %655 = vrot.lane.b32.xlu0 %v472, 8
        %v656 = vpop.permute.xlu0 %655
        %657 = vrot.lane.b32.xlu0 %v475, 8
        %v658 = vpop.permute.xlu0 %657
        %659 = vrot.lane.b32.xlu0 %v477, 8
        %v660 = vpop.permute.xlu0 %659
        %661 = vrot.lane.b32.xlu0 %v480, 8
        %v662 = vpop.permute.xlu0 %661
        %663 = vrot.lane.b32.xlu0 %v482, 8
        %v664 = vpop.permute.xlu0 %663
        %665 = vrot.lane.b32.xlu0 %v485, 8
        %v666 = vpop.permute.xlu0 %665
        %667 = vrot.lane.b32.xlu0 %v487, 8
        %v668 = vpop.permute.xlu0 %667
        %669 = vrot.lane.b32.xlu0 %v490, 8
        %v670 = vpop.permute.xlu0 %669
        %671 = vrot.lane.b32.xlu0 %v492, 8
        %v672 = vpop.permute.xlu0 %671
        %673 = vrot.lane.b32.xlu0 %v495, 8
        %v674 = vpop.permute.xlu0 %673
        %675 = vrot.lane.b32.xlu0 %v497, 8
        %v676 = vpop.permute.xlu0 %675
        %677 = vrot.lane.b32.xlu0 %v500, 8
        %v678 = vpop.permute.xlu0 %677
        %679 = vrot.lane.b32.xlu0 %v502, 8
        %v680 = vpop.permute.xlu0 %679
        %695 = vrot.lane.b32.xlu0 %v386, 12
        %v696 = vpop.permute.xlu0 %695
        %697 = vrot.lane.b32.xlu0 %v271, 12
        %v698 = vpop.permute.xlu0 %697
        %699 = vrot.lane.b32.xlu0 %v387, 12
        %v700 = vpop.permute.xlu0 %699
        %701 = vrot.lane.b32.xlu0 %v274, 12
        %v702 = vpop.permute.xlu0 %701
        %703 = vrot.lane.b32.xlu0 %v389, 12
        %v704 = vpop.permute.xlu0 %703
        %705 = vrot.lane.b32.xlu0 %v280, 12
        %v706 = vpop.permute.xlu0 %705
        %707 = vrot.lane.b32.xlu0 %v391, 12
        %v708 = vpop.permute.xlu0 %707
        %709 = vrot.lane.b32.xlu0 %v286, 12
        %v710 = vpop.permute.xlu0 %709
        %711 = vrot.lane.b32.xlu0 %v393, 12
        %v712 = vpop.permute.xlu0 %711
        %713 = vrot.lane.b32.xlu0 %v292, 12
        %v714 = vpop.permute.xlu0 %713
        %715 = vrot.lane.b32.xlu0 %v395, 12
        %v716 = vpop.permute.xlu0 %715
        %717 = vrot.lane.b32.xlu0 %v298, 12
        %v718 = vpop.permute.xlu0 %717
        %719 = vrot.lane.b32.xlu0 %v397, 12
        %v720 = vpop.permute.xlu0 %719
        %721 = vrot.lane.b32.xlu0 %v304, 12
        %v722 = vpop.permute.xlu0 %721
        %723 = vrot.lane.b32.xlu0 %v399, 12
        %v724 = vpop.permute.xlu0 %723
        %725 = vrot.lane.b32.xlu0 %v310, 12
        %v726 = vpop.permute.xlu0 %725
        %743 = vrot.lane.b32.xlu0 %v521, 16
        %v744 = vpop.permute.xlu0 %743
        %745 = vrot.lane.b32.xlu0 %v523, 16
        %v746 = vpop.permute.xlu0 %745
        %747 = vrot.lane.b32.xlu0 %v526, 16
        %v748 = vpop.permute.xlu0 %747
        %749 = vrot.lane.b32.xlu0 %v528, 16
        %v750 = vpop.permute.xlu0 %749
        %751 = vrot.lane.b32.xlu0 %v531, 16
        %v752 = vpop.permute.xlu0 %751
        %753 = vrot.lane.b32.xlu0 %v533, 16
        %v754 = vpop.permute.xlu0 %753
        %755 = vrot.lane.b32.xlu0 %v536, 16
        %v756 = vpop.permute.xlu0 %755
        %757 = vrot.lane.b32.xlu0 %v538, 16
        %v758 = vpop.permute.xlu0 %757
        %759 = vrot.lane.b32.xlu0 %v541, 16
        %v760 = vpop.permute.xlu0 %759
        %761 = vrot.lane.b32.xlu0 %v543, 16
        %v762 = vpop.permute.xlu0 %761
        %763 = vrot.lane.b32.xlu0 %v546, 16
        %v764 = vpop.permute.xlu0 %763
        %765 = vrot.lane.b32.xlu0 %v548, 16
        %v766 = vpop.permute.xlu0 %765
        %767 = vrot.lane.b32.xlu0 %v551, 16
        %v768 = vpop.permute.xlu0 %767
        %769 = vrot.lane.b32.xlu0 %v553, 16
        %v770 = vpop.permute.xlu0 %769
        %771 = vrot.lane.b32.xlu0 %v556, 16
        %v772 = vpop.permute.xlu0 %771
        %773 = vrot.lane.b32.xlu0 %v558, 16
        %v774 = vpop.permute.xlu0 %773
        %791 = vrot.lane.b32.xlu0 %v561, 20
        %v792 = vpop.permute.xlu0 %791
        %793 = vrot.lane.b32.xlu0 %v563, 20
        %v794 = vpop.permute.xlu0 %793
        %795 = vrot.lane.b32.xlu0 %v566, 20
        %v796 = vpop.permute.xlu0 %795
        %797 = vrot.lane.b32.xlu0 %v568, 20
        %v798 = vpop.permute.xlu0 %797
        %799 = vrot.lane.b32.xlu0 %v571, 20
        %v800 = vpop.permute.xlu0 %799
        %801 = vrot.lane.b32.xlu0 %v573, 20
        %v802 = vpop.permute.xlu0 %801
        %803 = vrot.lane.b32.xlu0 %v576, 20
        %v804 = vpop.permute.xlu0 %803
        %805 = vrot.lane.b32.xlu0 %v578, 20
        %v806 = vpop.permute.xlu0 %805
        %807 = vrot.lane.b32.xlu0 %v581, 20
        %v808 = vpop.permute.xlu0 %807
        %809 = vrot.lane.b32.xlu0 %v583, 20
        %v810 = vpop.permute.xlu0 %809
        %811 = vrot.lane.b32.xlu0 %v586, 20
        %v812 = vpop.permute.xlu0 %811
        %813 = vrot.lane.b32.xlu0 %v588, 20
        %v814 = vpop.permute.xlu0 %813
        %815 = vrot.lane.b32.xlu0 %v591, 20
        %v816 = vpop.permute.xlu0 %815
        %817 = vrot.lane.b32.xlu0 %v593, 20
        %v818 = vpop.permute.xlu0 %817
        %819 = vrot.lane.b32.xlu0 %v596, 20
        %v820 = vpop.permute.xlu0 %819
        %821 = vrot.lane.b32.xlu0 %v598, 20
        %v822 = vpop.permute.xlu0 %821
        %839 = vrot.lane.b32.xlu0 %v385, 24
        %v840 = vpop.permute.xlu0 %839
        %841 = vrot.lane.b32.xlu0 %v268, 24
        %v842 = vpop.permute.xlu0 %841
        %843 = vrot.lane.b32.xlu0 %v388, 24
        %v844 = vpop.permute.xlu0 %843
        %845 = vrot.lane.b32.xlu0 %v277, 24
        %v846 = vpop.permute.xlu0 %845
        %847 = vrot.lane.b32.xlu0 %v390, 24
        %v848 = vpop.permute.xlu0 %847
        %849 = vrot.lane.b32.xlu0 %v283, 24
        %v850 = vpop.permute.xlu0 %849
        %851 = vrot.lane.b32.xlu0 %v392, 24
        %v852 = vpop.permute.xlu0 %851
        %853 = vrot.lane.b32.xlu0 %v289, 24
        %v854 = vpop.permute.xlu0 %853
        %855 = vrot.lane.b32.xlu0 %v394, 24
        %v856 = vpop.permute.xlu0 %855
        %857 = vrot.lane.b32.xlu0 %v295, 24
        %v858 = vpop.permute.xlu0 %857
        %859 = vrot.lane.b32.xlu0 %v396, 24
        %v860 = vpop.permute.xlu0 %859
        %861 = vrot.lane.b32.xlu0 %v301, 24
        %v862 = vpop.permute.xlu0 %861
        %863 = vrot.lane.b32.xlu0 %v398, 24
        %v864 = vpop.permute.xlu0 %863
        %865 = vrot.lane.b32.xlu0 %v307, 24
        %v866 = vpop.permute.xlu0 %865
        %867 = vrot.lane.b32.xlu0 %v400, 24
        %v868 = vpop.permute.xlu0 %867
        %869 = vrot.lane.b32.xlu0 %v313, 24
        %v870 = vpop.permute.xlu0 %869
        %887 = vrot.lane.b32.xlu0 %v434, 28
        %v888 = vpop.permute.xlu0 %887
        %889 = vrot.lane.b32.xlu0 %v436, 28
        %v890 = vpop.permute.xlu0 %889
        %891 = vrot.lane.b32.xlu0 %v439, 28
        %v892 = vpop.permute.xlu0 %891
        %893 = vrot.lane.b32.xlu0 %v441, 28
        %v894 = vpop.permute.xlu0 %893
        %895 = vrot.lane.b32.xlu0 %v444, 28
        %v896 = vpop.permute.xlu0 %895
        %897 = vrot.lane.b32.xlu0 %v446, 28
        %v898 = vpop.permute.xlu0 %897
        %899 = vrot.lane.b32.xlu0 %v449, 28
        %v900 = vpop.permute.xlu0 %899
        %901 = vrot.lane.b32.xlu0 %v451, 28
        %v902 = vpop.permute.xlu0 %901
        %903 = vrot.lane.b32.xlu0 %v454, 28
        %v904 = vpop.permute.xlu0 %903
        %905 = vrot.lane.b32.xlu0 %v456, 28
        %v906 = vpop.permute.xlu0 %905
        %907 = vrot.lane.b32.xlu0 %v459, 28
        %v908 = vpop.permute.xlu0 %907
        %909 = vrot.lane.b32.xlu0 %v461, 28
        %v910 = vpop.permute.xlu0 %909
        %911 = vrot.lane.b32.xlu0 %v464, 28
        %v912 = vpop.permute.xlu0 %911
        %913 = vrot.lane.b32.xlu0 %v466, 28
        %v914 = vpop.permute.xlu0 %913
        %915 = vrot.lane.b32.xlu0 %v603, 28
        %v916 = vpop.permute.xlu0 %915
        %917 = vrot.lane.b32.xlu0 %v605, 28
        %v918 = vpop.permute.xlu0 %917
        %935 = vrot.lane.b32.xlu0 %v470, 32
        %v936 = vpop.permute.xlu0 %935
        %937 = vrot.lane.b32.xlu0 %v472, 32
        %v938 = vpop.permute.xlu0 %937
        %939 = vrot.lane.b32.xlu0 %v475, 32
        %v940 = vpop.permute.xlu0 %939
        %941 = vrot.lane.b32.xlu0 %v477, 32
        %v942 = vpop.permute.xlu0 %941
        %943 = vrot.lane.b32.xlu0 %v480, 32
        %v944 = vpop.permute.xlu0 %943
        %945 = vrot.lane.b32.xlu0 %v482, 32
        %v946 = vpop.permute.xlu0 %945
        %947 = vrot.lane.b32.xlu0 %v485, 32
        %v948 = vpop.permute.xlu0 %947
        %949 = vrot.lane.b32.xlu0 %v487, 32
        %v950 = vpop.permute.xlu0 %949
        %951 = vrot.lane.b32.xlu0 %v490, 32
        %v952 = vpop.permute.xlu0 %951
        %953 = vrot.lane.b32.xlu0 %v492, 32
        %v954 = vpop.permute.xlu0 %953
        %955 = vrot.lane.b32.xlu0 %v495, 32
        %v956 = vpop.permute.xlu0 %955
        %957 = vrot.lane.b32.xlu0 %v497, 32
        %v958 = vpop.permute.xlu0 %957
        %959 = vrot.lane.b32.xlu0 %v500, 32
        %v960 = vpop.permute.xlu0 %959
        %961 = vrot.lane.b32.xlu0 %v502, 32
        %v962 = vpop.permute.xlu0 %961
        %963 = vrot.lane.b32.xlu0 %v608, 32
        %v964 = vpop.permute.xlu0 %963
        %965 = vrot.lane.b32.xlu0 %v610, 32
        %v966 = vpop.permute.xlu0 %965
        %vm983 = vcmask 31744
        %v984 = vsel %vm983, %v385, %v612
        %v985 = vsel %vm983, %v268, %v614
        %v986 = vsel %vm983, %v388, %v616
        %v987 = vsel %vm983, %v277, %v618
        %v988 = vsel %vm983, %v390, %v620
        %v989 = vsel %vm983, %v283, %v622
        %v990 = vsel %vm983, %v392, %v624
        %v991 = vsel %vm983, %v289, %v626
        %v992 = vsel %vm983, %v394, %v628
        %v993 = vsel %vm983, %v295, %v630
        %v994 = vsel %vm983, %v396, %v632
        %v995 = vsel %vm983, %v301, %v634
        %v996 = vsel %vm983, %v398, %v636
        %v997 = vsel %vm983, %v307, %v638
        %vm998 = vcmask 64512
        %v999 = vsel %vm998, %v984, %v654
        %v1000 = vsel %vm998, %v985, %v656
        %v1001 = vsel %vm998, %v986, %v658
        %v1002 = vsel %vm998, %v987, %v660
        %v1003 = vsel %vm998, %v988, %v662
        %v1004 = vsel %vm998, %v989, %v664
        %v1005 = vsel %vm998, %v990, %v666
        %v1006 = vsel %vm998, %v991, %v668
        %v1007 = vsel %vm998, %v992, %v670
        %v1008 = vsel %vm998, %v993, %v672
        %v1009 = vsel %vm998, %v994, %v674
        %v1010 = vsel %vm998, %v995, %v676
        %v1011 = vsel %vm998, %v996, %v678
        %v1012 = vsel %vm998, %v997, %v680
        %vm1013 = vcmask 97280
        %v1014 = vsel %vm1013, %v999, %v696
        %v1015 = vsel %vm1013, %v1000, %v698
        %v1016 = vsel %vm1013, %v999, %v700
        %v1017 = vsel %vm1013, %v1000, %v702
        %v1018 = vsel %vm1013, %v1001, %v704
        %v1019 = vsel %vm1013, %v1002, %v706
        %v1020 = vsel %vm1013, %v1003, %v708
        %v1021 = vsel %vm1013, %v1004, %v710
        %v1022 = vsel %vm1013, %v1005, %v712
        %v1023 = vsel %vm1013, %v1006, %v714
        %v1024 = vsel %vm1013, %v1007, %v716
        %v1025 = vsel %vm1013, %v1008, %v718
        %v1026 = vsel %vm1013, %v1009, %v720
        %v1027 = vsel %vm1013, %v1010, %v722
        %v1028 = vsel %vm1013, %v1011, %v724
        %v1029 = vsel %vm1013, %v1012, %v726
        %vm1030 = vcmask 130048
        %v1031 = vsel %vm1030, %v1014, %v744
        %v1032 = vsel %vm1030, %v1015, %v746
        %v1033 = vsel %vm1030, %v1016, %v748
        %v1034 = vsel %vm1030, %v1017, %v750
        %v1035 = vsel %vm1030, %v1018, %v752
        %v1036 = vsel %vm1030, %v1019, %v754
        %v1037 = vsel %vm1030, %v1020, %v756
        %v1038 = vsel %vm1030, %v1021, %v758
        %v1039 = vsel %vm1030, %v1022, %v760
        %v1040 = vsel %vm1030, %v1023, %v762
        %v1041 = vsel %vm1030, %v1024, %v764
        %v1042 = vsel %vm1030, %v1025, %v766
        %v1043 = vsel %vm1030, %v1026, %v768
        %v1044 = vsel %vm1030, %v1027, %v770
        %v1045 = vsel %vm1030, %v1028, %v772
        %v1046 = vsel %vm1030, %v1029, %v774
        %vm1047 = vcmask 162816
        %v1048 = vsel %vm1047, %v1031, %v792
        %v1049 = vsel %vm1047, %v1032, %v794
        %v1050 = vsel %vm1047, %v1033, %v796
        %v1051 = vsel %vm1047, %v1034, %v798
        %v1052 = vsel %vm1047, %v1035, %v800
        %v1053 = vsel %vm1047, %v1036, %v802
        %v1054 = vsel %vm1047, %v1037, %v804
        %v1055 = vsel %vm1047, %v1038, %v806
        %v1056 = vsel %vm1047, %v1039, %v808
        %v1057 = vsel %vm1047, %v1040, %v810
        %v1058 = vsel %vm1047, %v1041, %v812
        %v1059 = vsel %vm1047, %v1042, %v814
        %v1060 = vsel %vm1047, %v1043, %v816
        %v1061 = vsel %vm1047, %v1044, %v818
        %v1062 = vsel %vm1047, %v1045, %v820
        %v1063 = vsel %vm1047, %v1046, %v822
        %vm1064 = vcmask 195584
        %v1065 = vsel %vm1064, %v1048, %v840
        %v1066 = vsel %vm1064, %v1049, %v842
        %v1067 = vsel %vm1064, %v1050, %v844
        %v1068 = vsel %vm1064, %v1051, %v846
        %v1069 = vsel %vm1064, %v1052, %v848
        %v1070 = vsel %vm1064, %v1053, %v850
        %v1071 = vsel %vm1064, %v1054, %v852
        %v1072 = vsel %vm1064, %v1055, %v854
        %v1073 = vsel %vm1064, %v1056, %v856
        %v1074 = vsel %vm1064, %v1057, %v858
        %v1075 = vsel %vm1064, %v1058, %v860
        %v1076 = vsel %vm1064, %v1059, %v862
        %v1077 = vsel %vm1064, %v1060, %v864
        %v1078 = vsel %vm1064, %v1061, %v866
        %v1079 = vsel %vm1064, %v1062, %v868
        %v1080 = vsel %vm1064, %v1063, %v870
        %vm1081 = vcmask 228352
        %v1082 = vsel %vm1081, %v1065, %v888
        %v1083 = vsel %vm1081, %v1066, %v890
        %v1084 = vsel %vm1081, %v1067, %v892
        %v1085 = vsel %vm1081, %v1068, %v894
        %v1086 = vsel %vm1081, %v1069, %v896
        %v1087 = vsel %vm1081, %v1070, %v898
        %v1088 = vsel %vm1081, %v1071, %v900
        %v1089 = vsel %vm1081, %v1072, %v902
        %v1090 = vsel %vm1081, %v1073, %v904
        %v1091 = vsel %vm1081, %v1074, %v906
        %v1092 = vsel %vm1081, %v1075, %v908
        %v1093 = vsel %vm1081, %v1076, %v910
        %v1094 = vsel %vm1081, %v1077, %v912
        %v1095 = vsel %vm1081, %v1078, %v914
        %v1096 = vsel %vm1081, %v1079, %v916
        %v1097 = vsel %vm1081, %v1080, %v918
        %vm1098 = vcmask 261120
        %v1099 = vsel %vm1098, %v1082, %v936
        %v1100 = vsel %vm1098, %v1083, %v938
        %v1101 = vsel %vm1098, %v1084, %v940
        %v1102 = vsel %vm1098, %v1085, %v942
        %v1103 = vsel %vm1098, %v1086, %v944
        %v1104 = vsel %vm1098, %v1087, %v946
        %v1105 = vsel %vm1098, %v1088, %v948
        %v1106 = vsel %vm1098, %v1089, %v950
        %v1107 = vsel %vm1098, %v1090, %v952
        %v1108 = vsel %vm1098, %v1091, %v954
        %v1109 = vsel %vm1098, %v1092, %v956
        %v1110 = vsel %vm1098, %v1093, %v958
        %v1111 = vsel %vm1098, %v1094, %v960
        %v1112 = vsel %vm1098, %v1095, %v962
        %v1113 = vsel %vm1098, %v1096, %v964
        %v1114 = vsel %vm1098, %v1097, %v966
        %v1131 = vrot.slane %v1099, 2
        %v1132 = vrot.slane %v1099, 4
        %v1133 = vrot.slane %v1099, 6
        %v1134 = vrot.slane %v1100, 2
        %v1135 = vrot.slane %v1100, 4
        %v1136 = vrot.slane %v1100, 6
        %v1137 = vrot.slane %v1101, 2
        %v1138 = vrot.slane %v1101, 4
        %v1139 = vrot.slane %v1101, 6
        %v1140 = vrot.slane %v1102, 2
        %v1141 = vrot.slane %v1102, 4
        %v1142 = vrot.slane %v1102, 6
        %v1143 = vrot.slane %v1103, 2
        %v1144 = vrot.slane %v1103, 4
        %v1145 = vrot.slane %v1103, 6
        %v1146 = vrot.slane %v1104, 2
        %v1147 = vrot.slane %v1104, 4
        %v1148 = vrot.slane %v1104, 6
        %v1149 = vrot.slane %v1105, 2
        %v1150 = vrot.slane %v1105, 4
        %v1151 = vrot.slane %v1105, 6
        %v1152 = vrot.slane %v1106, 2
        %v1153 = vrot.slane %v1106, 4
        %v1154 = vrot.slane %v1106, 6
        %v1155 = vrot.slane %v1107, 2
        %v1156 = vrot.slane %v1107, 4
        %v1157 = vrot.slane %v1107, 6
        %v1158 = vrot.slane %v1108, 2
        %v1159 = vrot.slane %v1108, 4
        %v1160 = vrot.slane %v1108, 6
        %v1161 = vrot.slane %v1109, 2
        %v1162 = vrot.slane %v1109, 4
        %v1163 = vrot.slane %v1109, 6
        %v1164 = vrot.slane %v1110, 2
        %v1165 = vrot.slane %v1110, 4
        %v1166 = vrot.slane %v1110, 6
        %v1167 = vrot.slane %v1111, 2
        %v1168 = vrot.slane %v1111, 4
        %v1169 = vrot.slane %v1111, 6
        %v1170 = vrot.slane %v1112, 2
        %v1171 = vrot.slane %v1112, 4
        %v1172 = vrot.slane %v1112, 6
        %v1173 = vrot.slane %v1113, 2
        %v1174 = vrot.slane %v1113, 4
        %v1175 = vrot.slane %v1113, 6
        %v1176 = vrot.slane %v1114, 2
        %v1177 = vrot.slane %v1114, 4
        %v1178 = vrot.slane %v1114, 6
        %v1179 = vld [vmem:[%s1] sm:$0xff]
        %v1180 = vld [vmem:[%s2] sm:$0xff]
        %1182 = vset.pattern.permute.xlu0 0
        %1183 = vperm.xlu0 %1182, %v1180
        %v1184 = vpop.permute.xlu0 %1183
        %v1186 = vperm.slane %v1099, 0
        %v1187 = vperm.slane %v1131, 0
        %v1188 = vperm.slane %v1132, 0
        %v1189 = vperm.slane %v1133, 0
        %v1190 = vperm.slane %v1100, 0
        %v1191 = vperm.slane %v1134, 0
        %v1192 = vperm.slane %v1135, 0
        %v1193 = vperm.slane %v1136, 0
        %v1194 = vperm.slane %v1101, 0
        %v1195 = vperm.slane %v1137, 0
        %v1196 = vperm.slane %v1138, 0
        %v1197 = vperm.slane %v1139, 0
        %v1198 = vperm.slane %v1102, 0
        %v1199 = vperm.slane %v1140, 0
        %v1200 = vperm.slane %v1141, 0
        %v1201 = vperm.slane %v1142, 0
        %v1202 = vperm.slane %v1103, 0
        %v1203 = vperm.slane %v1143, 0
        %v1204 = vperm.slane %v1144, 0
        %v1205 = vperm.slane %v1145, 0
        %v1206 = vperm.slane %v1104, 0
        %v1207 = vperm.slane %v1146, 0
        %v1208 = vperm.slane %v1147, 0
        %v1209 = vperm.slane %v1148, 0
        %v1210 = vperm.slane %v1105, 0
        %v1211 = vperm.slane %v1149, 0
        %v1212 = vperm.slane %v1150, 0
        %v1213 = vperm.slane %v1151, 0
        %v1214 = vperm.slane %v1106, 0
        %v1215 = vperm.slane %v1152, 0
        %v1216 = vperm.slane %v1153, 0
        %v1217 = vperm.slane %v1154, 0
        %v1218 = vperm.slane %v1107, 0
        %v1219 = vperm.slane %v1155, 0
        %v1220 = vperm.slane %v1156, 0
        %v1221 = vperm.slane %v1157, 0
        %v1222 = vperm.slane %v1108, 0
        %v1223 = vperm.slane %v1158, 0
        %v1224 = vperm.slane %v1159, 0
        %v1225 = vperm.slane %v1160, 0
        %v1226 = vperm.slane %v1109, 0
        %v1227 = vperm.slane %v1161, 0
        %v1228 = vperm.slane %v1162, 0
        %v1229 = vperm.slane %v1163, 0
        %v1230 = vperm.slane %v1110, 0
        %v1231 = vperm.slane %v1164, 0
        %v1232 = vperm.slane %v1165, 0
        %v1233 = vperm.slane %v1166, 0
        %v1234 = vperm.slane %v1111, 0
        %v1235 = vperm.slane %v1167, 0
        %v1236 = vperm.slane %v1168, 0
        %v1237 = vperm.slane %v1169, 0
        %v1238 = vperm.slane %v1112, 0
        %v1239 = vperm.slane %v1170, 0
        %v1240 = vperm.slane %v1171, 0
        %v1241 = vperm.slane %v1172, 0
        %v1242 = vperm.slane %v1113, 0
        %v1243 = vperm.slane %v1173, 0
        %v1244 = vperm.slane %v1174, 0
        %v1245 = vperm.slane %v1175, 0
        %v1246 = vperm.slane %v1114, 0
        %v1247 = vperm.slane %v1176, 0
        %v1248 = vperm.slane %v1177, 0
        %v1249 = vperm.slane %v1178, 0
        %vm1250 = vcmask 1041409
        %v1251 = vsel %vm1250, %v1187, %v1186
        %vm1252 = vcmask 1042434
        %v1253 = vsel %vm1252, %v1188, %v1251
        %vm1254 = vcmask 1043459
        %v1255 = vsel %vm1254, %v1189, %v1253
        %vm1256 = vcmask 1044484
        %v1257 = vsel %vm1256, %v1190, %v1255
        %vm1258 = vcmask 1045509
        %v1259 = vsel %vm1258, %v1191, %v1257
        %vm1260 = vcmask 1046534
        %v1261 = vsel %vm1260, %v1192, %v1259
        %vm1262 = vcmask 1047559
        %v1263 = vsel %vm1262, %v1193, %v1261
        %v1264 = vsel %vm1250, %v1195, %v1194
        %v1265 = vsel %vm1252, %v1196, %v1264
        %v1266 = vsel %vm1254, %v1197, %v1265
        %v1267 = vsel %vm1256, %v1198, %v1266
        %v1268 = vsel %vm1258, %v1199, %v1267
        %v1269 = vsel %vm1260, %v1200, %v1268
        %v1270 = vsel %vm1262, %v1201, %v1269
        %v1271 = vsel %vm1250, %v1203, %v1202
        %v1272 = vsel %vm1252, %v1204, %v1271
        %v1273 = vsel %vm1254, %v1205, %v1272
        %v1274 = vsel %vm1256, %v1206, %v1273
        %v1275 = vsel %vm1258, %v1207, %v1274
        %v1276 = vsel %vm1260, %v1208, %v1275
        %v1277 = vsel %vm1262, %v1209, %v1276
        %v1278 = vsel %vm1250, %v1211, %v1210
        %v1279 = vsel %vm1252, %v1212, %v1278
        %v1280 = vsel %vm1254, %v1213, %v1279
        %v1281 = vsel %vm1256, %v1214, %v1280
        %v1282 = vsel %vm1258, %v1215, %v1281
        %v1283 = vsel %vm1260, %v1216, %v1282
        %v1284 = vsel %vm1262, %v1217, %v1283
        %v1285 = vsel %vm1250, %v1219, %v1218
        %v1286 = vsel %vm1252, %v1220, %v1285
        %v1287 = vsel %vm1254, %v1221, %v1286
        %v1288 = vsel %vm1256, %v1222, %v1287
        %v1289 = vsel %vm1258, %v1223, %v1288
        %v1290 = vsel %vm1260, %v1224, %v1289
        %v1291 = vsel %vm1262, %v1225, %v1290
        %v1292 = vsel %vm1250, %v1227, %v1226
        %v1293 = vsel %vm1252, %v1228, %v1292
        %v1294 = vsel %vm1254, %v1229, %v1293
        %v1295 = vsel %vm1256, %v1230, %v1294
        %v1296 = vsel %vm1258, %v1231, %v1295
        %v1297 = vsel %vm1260, %v1232, %v1296
        %v1298 = vsel %vm1262, %v1233, %v1297
        %v1299 = vsel %vm1250, %v1235, %v1234
        %v1300 = vsel %vm1252, %v1236, %v1299
        %v1301 = vsel %vm1254, %v1237, %v1300
        %v1302 = vsel %vm1256, %v1238, %v1301
        %v1303 = vsel %vm1258, %v1239, %v1302
        %v1304 = vsel %vm1260, %v1240, %v1303
        %v1305 = vsel %vm1262, %v1241, %v1304
        %v1306 = vsel %vm1250, %v1243, %v1242
        %v1307 = vsel %vm1252, %v1244, %v1306
        %v1308 = vsel %vm1254, %v1245, %v1307
        %v1309 = vsel %vm1256, %v1246, %v1308
        %v1310 = vsel %vm1258, %v1247, %v1309
        %v1311 = vsel %vm1260, %v1248, %v1310
        %v1312 = vsel %vm1262, %v1249, %v1311
        %vm1313 = vcmask 293888
        %v1315 = vsel %vm1313, %v1179, 0
        %v1317 = vsel %vm1313, %v1263, 0
        %v1319 = vsel %vm1313, %v1270, 0
        %v1321 = vsel %vm1313, %v1277, 0
        %v1323 = vsel %vm1313, %v1284, 0
        %v1325 = vsel %vm1313, %v1291, 0
        %v1327 = vsel %vm1313, %v1298, 0
        %v1329 = vsel %vm1313, %v1305, 0
        %v1331 = vsel %vm1313, %v1312, 0
        %1333 = vmatpush.xpose.msra.mxu0 0.0
        %1334 = vmatpush.xpose.msra.mxu0 0.0
        %1335 = vmatpush.xpose.msra.mxu0 0.0
        %1336 = vmatpush.xpose.msra.mxu0 0.0
        %1337 = vmatpush.xpose.msra.mxu0 0.0
        %1338 = vmatpush.xpose.msra.mxu0 0.0
        %1339 = vmatpush.xpose.msra.mxu0 0.0
        %1340 = vmatpush.xpose.msra.mxu0 0.0
        %1341 = vmatpush.xpose.msra.mxu0 %v1331
        %1342 = vmatpush.xpose.msra.mxu0 %v1329
        %1343 = vmatpush.xpose.msra.mxu0 %v1327
        %1344 = vmatpush.xpose.msra.mxu0 %v1325
        %1345 = vmatpush.xpose.msra.mxu0 %v1323
        %1346 = vmatpush.xpose.msra.mxu0 %v1321
        %1347 = vmatpush.xpose.msra.mxu0 %v1319
        %1348 = vmatpush.xpose.msra.mxu0 %v1317
        %1349 = vmatmul.f32.gmra.mxu0 %v1315
        %v1350 = vpop.f32.mrf.mxu0
        %v1351 = vadd.f32 %v1184, %v1350
        %1352 = vdwg.mxu0
        %vm1353 = vcmask 523264
        %1354 = vst.msk [vmem:[%s163] sm:$0xff] %vm1353, %v1351
        %s1355 = sand.u32 %s93, 1
        %s1356 = scalar_lea.sflag [#allocation3], %s1355
        %s1357 = sand.u32 %s93, 1
        %s1358 = smul.addr %s1357, 8
        %s1359 = scalar_lea.vmem [#allocation2], %s1358
        // Predicated region
        $region33: #{tpu_custom_call.1} parent=31 // pred_check
          %p1360 = pneg %p103
        $region34: #{tpu_custom_call.1} parent=31 // pred_check_branch
          %1362 = sbr.rel (%p1360) target = $region36
        $region35: #{tpu_custom_call.1} parent=31 // pred_region
          %1364 = vsyncadd %s1356, 0
          %s1365 = smul.addr %s17, 8
          %s1366 = scalar_lea.hbm %s3, %s1365
          %s1368 = sshll.u32 %s1359, 4
          %s1369 = int_to_ptr.vmem [resolvable:$true] %s1368
          %s1370 = sshll.u32 %s1366, 4
          %s1371 = int_to_ptr.hbm [resolvable:$true] %s1370
          %1373 = dma.vmem_to_hbm [thread:$0]  %s1369, 128, %s1371, %s1356
        $region36: #{tpu_custom_call.1} parent=31 // pred_fallthru
          _
      $region32: #{tpu_custom_call.1} parent=5 // pred_fallthru
        _
      %p1374 = scmp.le.s32.totalorder 2, %s12
      // Predicated region
      $region37: #{tpu_custom_call.1} parent=5 // pred_check
        %p1375 = pneg %p1374
      $region38: #{tpu_custom_call.1} parent=5 // pred_check_branch
        %1377 = sbr.rel (%p1375) target = $region40
      $region39: #{tpu_custom_call.1} parent=5 // pred_region
        %s1378 = ssub.s32 %s12, 2
        // Predicated region
        $region41: #{tpu_custom_call.1} parent=39 // pred_check
          %p1379 = pneg %p109
        $region42: #{tpu_custom_call.1} parent=39 // pred_check_branch
          %1381 = sbr.rel (%p1379) target = $region44
        $region43: #{tpu_custom_call.1} parent=39 // pred_region
          %s1382 = sand.u32 %s94, 1
          %s1383 = scalar_lea.sflag [#allocation3], %s1382
          %s1384 = sand.u32 %s94, 1
          %s1385 = smul.addr %s1384, 8
          %s1386 = scalar_lea.vmem [#allocation2], %s1385
          %1388 = dma.done %s1383, 128
        $region44: #{tpu_custom_call.1} parent=39 // pred_fallthru
          _
      $region40: #{tpu_custom_call.1} parent=5 // pred_fallthru
        _
    $region6: #{tpu_custom_call.1} parent=1 // loop_footer
      %s16 = sadd.s32 1, %s12
    $region7: #{tpu_custom_call.1} parent=1 // loop_footer_branch
      %11 = sbr.rel target = $region3
    $region8: #{tpu_custom_call.1} parent=1 // loop_exit
      _
    %1389 = vsyncpa [#allocation3], 1
    %s1390 = scalar_lea.sflag [#allocation3], 1
    %1391 = vsyncpa %s1390, 1

</llo_original>
